<compile_context>
chip_gen: v6e
topology: v6e:2x2x1
jax: 0.10.0
libtpu: 0.0.40
codegen_flags: <defaults>
</compile_context>

<pallas_src>
import functools

import jax
import jax.numpy as jnp
from jax.experimental import pallas as pl
from jax.experimental.pallas import tpu as pltpu


def _softplus(x):
    # numerically stable softplus, matches torch.nn.functional.softplus
    return jnp.logaddexp(x, 0.0)


def _apply_constraint(raw, constraint):
    if constraint == "legacy":
        return jnp.clip(_softplus(raw + 3.5) + 25.0, 5.0, 100.0)
    if constraint == "unconstrained":
        return jnp.exp(raw)
    # 'natural' and the default branch of ensure_positive_output
    return _softplus(raw) + 1e-6


def _block_rows(batch, block_rows):
    # sublane-aligned tile height, never larger than needed
    return min(block_rows, max(8, ((batch + 7) // 8) * 8))


# ---------------------------------------------------------------------------
# Kernel 1: linear scoring head + output constraint (forward only)
# ---------------------------------------------------------------------------
def scoring_kernel(b_ref, x_ref, w_ref, widths_ref, *, constraint):
    # GEMV on the VPU: broadcast (1, D) weight row, multiply, lane-reduce (XLU).
    raw = jnp.sum(x_ref[...] * w_ref[...], axis=-1, keepdims=True) + b_ref[0]
    widths_ref[...] = _apply_constraint(raw, constraint).astype(widths_ref.dtype)


def scoring_forward(x, w, b, constraint="natural", block_rows=1024):
    """x: [B, D] f32, w: [D, 1], b: [1]  ->  positive widths [B, 1] f32."""
    B, D = x.shape
    TB = _block_rows(B, block_rows)
    grid = (pl.cdiv(B, TB),)

    x_f = x.astype(jnp.float32)
    w_row = w.astype(jnp.float32).reshape(1, D)          # resident in VMEM
    b_s = b.astype(jnp.float32).reshape(1)               # SMEM scalar

    return pl.pallas_call(
        functools.partial(scoring_kernel, constraint=constraint),
        out_shape=jax.ShapeDtypeStruct((B, 1), jnp.float32),
        grid=grid,
        in_specs=[
            pl.BlockSpec(memory_space=pltpu.MemorySpace.SMEM),     # bias scalar
            pl.BlockSpec((TB, D), lambda i: (i, 0)),               # batch-tiled x
            pl.BlockSpec((1, D), lambda i: (0, 0)),                # resident w row
        ],
        out_specs=pl.BlockSpec((TB, 1), lambda i: (i, 0)),
        compiler_params=pltpu.CompilerParams(
            dimension_semantics=("parallel",)),
    )(b_s, x_f, w_row)


# ---------------------------------------------------------------------------
# Kernel 2: fused scoring head + get_prediction_intervals
#   (one pass: widths never round-trip through HBM)
# ---------------------------------------------------------------------------
def fused_scoring_interval_kernel(sc_ref, x_ref, w_ref, pred_ref,
                                  widths_ref, lo_ref, hi_ref, *, constraint):
    b = sc_ref[0]
    tau = sc_ref[1]
    raw = jnp.sum(x_ref[...] * w_ref[...], axis=-1, keepdims=True) + b
    widths = _apply_constraint(raw, constraint)
    widths_ref[...] = widths.astype(widths_ref.dtype)

    iw = widths * tau                                     # [TB, 1] -> broadcast to 4
    lo_ref[...] = (pred_ref[...] - iw).astype(lo_ref.dtype)
    hi_ref[...] = (pred_ref[...] + iw).astype(hi_ref.dtype)


def scoring_with_intervals(x, w, b, predictions, tau,
                           constraint="natural", block_rows=1024):
    """Fused forward + get_prediction_intervals.

    x: [B, D], w: [D, 1], b: [1], predictions: [B, 4], tau: scalar
    -> (widths [B, 1], lower [B, 4], upper [B, 4]) f32.
    """
    B, D = x.shape
    TB = _block_rows(B, block_rows)
    grid = (pl.cdiv(B, TB),)

    x_f = x.astype(jnp.float32)
    w_row = w.astype(jnp.float32).reshape(1, D)
    pred_f = predictions.astype(jnp.float32)
    scalars = jnp.stack([
        b.astype(jnp.float32).reshape(()),
        jnp.asarray(tau, dtype=jnp.float32).reshape(()),
    ])                                                    # SMEM [b, tau]

    widths, lower, upper = pl.pallas_call(
        functools.partial(fused_scoring_interval_kernel, constraint=constraint),
        out_shape=(
            jax.ShapeDtypeStruct((B, 1), jnp.float32),
            jax.ShapeDtypeStruct((B, 4), jnp.float32),
            jax.ShapeDtypeStruct((B, 4), jnp.float32),
        ),
        grid=grid,
        in_specs=[
            pl.BlockSpec(memory_space=pltpu.MemorySpace.SMEM),     # [b, tau]
            pl.BlockSpec((TB, D), lambda i: (i, 0)),               # x tile
            pl.BlockSpec((1, D), lambda i: (0, 0)),                # resident w row
            pl.BlockSpec((TB, 4), lambda i: (i, 0)),               # predictions tile
        ],
        out_specs=(
            pl.BlockSpec((TB, 1), lambda i: (i, 0)),
            pl.BlockSpec((TB, 4), lambda i: (i, 0)),
            pl.BlockSpec((TB, 4), lambda i: (i, 0)),
        ),
        compiler_params=pltpu.CompilerParams(
            dimension_semantics=("parallel",)),
    )(scalars, x_f, w_row, pred_f)

    return widths, lower, upper


# ---------------------------------------------------------------------------
# Reference (pure JAX) for numerical sanity check
# ---------------------------------------------------------------------------
def _ref_scoring(x, w, b, constraint):
    raw = x @ w + b
    if constraint == "legacy":
        return jnp.clip(jax.nn.softplus(raw + 3.5) + 25.0, 5.0, 100.0)
    if constraint == "unconstrained":
        return jnp.exp(raw)
    return jax.nn.softplus(raw) + 1e-6


if __name__ == "__main__":
    key = jax.random.PRNGKey(0)
    k_x, k_w, k_b, k_p = jax.random.split(key, 4)

    batch, input_dim = 2, 17          # BaseScoringFunction default input_dim
    x = jax.random.normal(k_x, (batch, input_dim), jnp.float32)

    # Deterministic synthetic parameters for the minimal linear scoring head.
    w = 0.1 * jax.random.normal(k_w, (input_dim, 1), jnp.float32)
    b = 0.1 * jax.random.normal(k_b, (1,), jnp.float32)
    predictions = 10.0 * jax.random.normal(k_p, (batch, 4), jnp.float32)
    tau = 0.5

    ok = True

    # forward-only path for every output_constraint branch
    for constraint in ("natural", "legacy", "unconstrained"):
        widths = scoring_forward(x, w, b, constraint=constraint)
        widths = jax.block_until_ready(widths)
        ref = _ref_scoring(x, w, b, constraint)
        ok &= bool(jnp.allclose(widths, ref, atol=1e-5, rtol=1e-5))

    # fused forward + get_prediction_intervals path (tau set via set_tau in torch)
    widths_f, lo, hi = scoring_with_intervals(x, w, b, predictions, tau,
                                              constraint="natural")
    widths_f, lo, hi = jax.block_until_ready((widths_f, lo, hi))

    ref_w = _ref_scoring(x, w, b, "natural")
    iw_ref = ref_w * tau
    ok &= bool(jnp.allclose(widths_f, ref_w, atol=1e-5, rtol=1e-5))
    ok &= bool(jnp.allclose(lo, predictions - iw_ref, atol=1e-5))
    ok &= bool(jnp.allclose(hi, predictions + iw_ref, atol=1e-5))

    if ok:
        print("KERNEL_OK")
    else:
        print("KERNEL_MISMATCH")
</pallas_src>

<mosaic_0001>
module attributes {stable_mosaic.version = 11 : i64} {
  func.func @scoring_kernel(%arg0: i32, %arg1: memref<1xf32, #tpu.memory_space<smem>>, %arg2: memref<8x17xf32, #tpu.memory_space<vmem>>, %arg3: memref<1x17xf32, #tpu.memory_space<vmem>>, %arg4: memref<8x1xf32, #tpu.memory_space<vmem>>) attributes {dimension_semantics = [#tpu.dimension_semantics<parallel>], iteration_bounds = array<i64: 1>, scalar_prefetch = 0 : i64, scratch_operands = 0 : i64, tpu.core_type = #tpu.core_type<tc>, window_params = [{transform_indices = @transform_0, window_bounds = array<i64: 1>}, {transform_indices = @transform_1, window_bounds = array<i64: 8, 17>}, {pipeline_mode = #tpu.pipeline_mode<synchronous>, transform_indices = @transform_2, window_bounds = array<i64: 1, 17>}, {transform_indices = @transform_3, window_bounds = array<i64: 8, 1>}]} {
    %c0 = arith.constant 0 : index
    %c0_0 = arith.constant 0 : index
    %0 = vector.load %arg2[%c0, %c0_0] : memref<8x17xf32, #tpu.memory_space<vmem>>, vector<8x17xf32>
    %c0_1 = arith.constant 0 : index
    %c0_2 = arith.constant 0 : index
    %1 = vector.load %arg3[%c0_1, %c0_2] : memref<1x17xf32, #tpu.memory_space<vmem>>, vector<1x17xf32>
    %2 = vector.broadcast %1 : vector<1x17xf32> to vector<8x17xf32>
    %3 = arith.mulf %0, %2 : vector<8x17xf32>
    %cst = arith.constant dense<0.000000e+00> : vector<8xf32>
    %4 = vector.multi_reduction <add>, %3, %cst [1] : vector<8x17xf32> to vector<8xf32>
    %5 = vector.shape_cast %4 : vector<8xf32> to vector<8x1xf32>
    %c0_3 = arith.constant 0 : index
    %6 = memref.load %arg1[%c0_3] : memref<1xf32, #tpu.memory_space<smem>>
    %7 = vector.broadcast %6 : f32 to vector<8x1xf32>
    %8 = arith.addf %5, %7 : vector<8x1xf32>
    %cst_4 = arith.constant 0.000000e+00 : f32
    %9 = vector.broadcast %cst_4 : f32 to vector<8x1xf32>
    %10 = arith.maximumf %8, %9 : vector<8x1xf32>
    %11 = vector.broadcast %cst_4 : f32 to vector<8x1xf32>
    %12 = arith.subf %8, %11 : vector<8x1xf32>
    %13 = arith.cmpf one, %12, %12 : vector<8x1xf32>
    %14 = vector.broadcast %cst_4 : f32 to vector<8x1xf32>
    %15 = arith.addf %8, %14 : vector<8x1xf32>
    %16 = math.absf %12 : vector<8x1xf32>
    %cst_5 = arith.constant 0.000000e+00 : f32
    %17 = vector.broadcast %cst_5 : f32 to vector<8x1xf32>
    %18 = arith.subf %17, %16 : vector<8x1xf32>
    %19 = math.exp %18 : vector<8x1xf32>
    %20 = math.log1p %19 : vector<8x1xf32>
    %21 = arith.addf %10, %20 : vector<8x1xf32>
    %22 = arith.select %13, %15, %21 : vector<8x1xi1>, vector<8x1xf32>
    %cst_6 = arith.constant 9.99999997E-7 : f32
    %23 = vector.broadcast %cst_6 : f32 to vector<8x1xf32>
    %24 = arith.addf %22, %23 : vector<8x1xf32>
    %c0_7 = arith.constant 0 : index
    %c0_8 = arith.constant 0 : index
    %25 = vector.load %arg4[%c0_7, %c0_8] : memref<8x1xf32, #tpu.memory_space<vmem>>, vector<8x1xf32>
    tpu.vector_store %arg4[%c0_7, %c0_8], %24 {strides = array<i32>} : memref<8x1xf32, #tpu.memory_space<vmem>>, vector<8x1xf32>,
    return
  }
  func.func @transform_0(%arg0: i32) -> i32 {
    %c0_i32 = arith.constant 0 : i32
    %c0_i32_0 = arith.constant 0 : i32
    return %c0_i32 : i32
  }
  func.func @transform_1(%arg0: i32) -> (i32, i32) {
    %c0_i32 = arith.constant 0 : i32
    %c0_i32_0 = arith.constant 0 : i32
    return %arg0, %c0_i32 : i32, i32
  }
  func.func @transform_2(%arg0: i32) -> (i32, i32) {
    %c0_i32 = arith.constant 0 : i32
    %c0_i32_0 = arith.constant 0 : i32
    %c0_i32_1 = arith.constant 0 : i32
    return %c0_i32, %c0_i32_0 : i32, i32
  }
  func.func @transform_3(%arg0: i32) -> (i32, i32) {
    %c0_i32 = arith.constant 0 : i32
    %c0_i32_0 = arith.constant 0 : i32
    return %arg0, %c0_i32 : i32, i32
  }
}

</mosaic_0001>

<llo_original>
// kernel: tpu_custom_call.1
$region0: #{tpu_custom_call.1}
  #allocation0 [shape = 'u32[]', space=smem, size = 0x4, offset = 0x4, fixed_abs, tag = 'smem constant byte address 0x4 - core index']
  #allocation1 [shape = 'u32[144,128]{1,0:T(1,128)}', space=vmem, size = 0x12000, scoped, tag = 'internal scratch']
  #allocation2 [shape = 'f32[1]{0:T(128)S(6)}', space=smem, size = 0x200, scoped, tag = 'scoped memory for tpu_custom_call.1']
  %s0 = inlined_call_operand.<no memory space> [shape: f32[1], index: 0, kind: input, shape index: {}]
  %s1 = inlined_call_operand.vmem [shape: f32[2,17], index: 1, kind: input, shape index: {}]
  %s2 = inlined_call_operand.vmem [shape: f32[1,17], index: 2, kind: input, shape index: {}]
  %s3 = inlined_call_operand.vmem [shape: f32[2,1], index: 3, kind: output, shape index: {}]
  %s4 = sld [smem:[#allocation0]]
  $region52: #{tpu_custom_call.1} parent=0
    _
  %s6 = ssub.s32 1, %s4
  %s7 = scalar_select 0, %s6, %s4
  %8 = sst [smem:[#allocation2]] %s0
  $region1: #{tpu_custom_call.1} parent=0
    #allocation3 [shape = 'u8[4096]{0}', space=vmem, size = 0x1000, scoped, tag = 'output window, operand 0, single buffered']
    // Predicated region
    $region2: #{tpu_custom_call.1} parent=1 // pred_check
      _
    $region3: #{tpu_custom_call.1} parent=1 // pred_check_branch
      %10 = sbr.rel (0) target = $region5
    $region4: #{tpu_custom_call.1} parent=1 // pred_region
      _
    $region5: #{tpu_custom_call.1} parent=1 // pred_fallthru
      _
    // Predicated region
    $region6: #{tpu_custom_call.1} parent=1 // pred_check
      _
    $region7: #{tpu_custom_call.1} parent=1 // pred_check_branch
      %12 = sbr.rel (0) target = $region9
    $region8: #{tpu_custom_call.1} parent=1 // pred_region
      _
    $region9: #{tpu_custom_call.1} parent=1 // pred_fallthru
      _
    // Predicated region
    $region10: #{tpu_custom_call.1} parent=1 // pred_check
      _
    $region11: #{tpu_custom_call.1} parent=1 // pred_check_branch
      %14 = sbr.rel (0) target = $region13
    $region12: #{tpu_custom_call.1} parent=1 // pred_region
      _
    $region13: #{tpu_custom_call.1} parent=1 // pred_fallthru
      _
    %v15 = vld [vmem:[%s1] sm:$0xff]
    %v16 = vld [vmem:[%s2] sm:$0x1]
    %v18 = vlaneseq
    %v19 = vshrl.u32 %v18, 7
    %v20 = vsub.s32 0, %v19
    %v21 = vrot.slane %v16, %v20
    %v23 = vmul.f32 %v15, %v21
    %vm24 = vcmask 138240
    %v25 = vsel %vm24, %v23, 0.0
    %26 = vadd.xlane.f32.xlu0 %v25
    %v27 = vpop.xlane.xlu0 %26
    %s28 = sld [smem:[#allocation2]]
    %v29 = vstv %s28
    %v30 = vadd.f32 %v27, %v29
    %v31 = vmax.f32 %v30, 0.0
    %vm32 = vcmp.ne.f32.partialorder %v30, %v30
    %v33 = vadd.f32 %v30, 0.0
    %v34 = vand.u32 2147483647, %v30
    %v35 = vsub.f32 0.0, %v34
    %v36 = vmul.f32 %v35, 1.442695
    %v37 = vpow.pop %v36
    %v38 = vadd.f32 %v37, 1.0
    %v39 = vlog2.pop %v38
    %v40 = vmul.f32 %v39, 0.6931472
    %v41 = vmul.f32 -0.5, %v37
    %v42 = vadd.f32 %v41, 1.0
    %v43 = vmul.f32 %v42, %v37
    %v44 = vand.u32 2147483647, %v37
    %vm45 = vcmp.lt.f32.partialorder %v44, 0.0004427343
    %v46 = vsel %vm45, %v43, %v40
    %v47 = vadd.f32 %v31, %v46
    %v48 = vsel %vm32, %v33, %v47
    %v49 = vadd.f32 %v48, 1e-06
    %vm50 = vcmask 7168
    %51 = vst.msk [vmem:[#allocation3] sm:$0xff] %vm50, %v49
    // Predicated region
    $region14: #{tpu_custom_call.1} parent=1 // pred_check
      _
    $region15: #{tpu_custom_call.1} parent=1 // pred_check_branch
      %53 = sbr.rel (0) target = $region17
    $region16: #{tpu_custom_call.1} parent=1 // pred_region
      // Predicated region
      $region18: #{tpu_custom_call.1} parent=16 // pred_check
        _
      $region19: #{tpu_custom_call.1} parent=16 // pred_check_branch
        %55 = sbr.rel (0) target = $region21
      $region20: #{tpu_custom_call.1} parent=16 // pred_region
        // Predicated region
        $region22: #{tpu_custom_call.1} parent=20 // pred_check
          _
        $region23: #{tpu_custom_call.1} parent=20 // pred_check_branch
          %57 = sbr.rel target = $region25
        $region24: #{tpu_custom_call.1} parent=20 // pred_region
          // Predicated region
          $region37: #{tpu_custom_call.1} parent=24 // pred_check
            _
          $region38: #{tpu_custom_call.1} parent=24 // pred_check_branch
            %73 = sbr.rel (0) target = $region40
          $region39: #{tpu_custom_call.1} parent=24 // pred_region
            %s75 = ssub.s32 4, 1
            loop: start=0, step=1, limit=1
            $region41: #{tpu_custom_call.1} parent=39 // loop_pre_header
              _
            $region42: #{tpu_custom_call.1} parent=39 // loop_header
              %s77 = sphi 0, %s81
              %p78 = scmp.ge.s32.totalorder %s77, 1
              %s82 = sphi [#allocation3], [#allocation3]
              %s83 = sphi %s3, %s3
            $region43: #{tpu_custom_call.1} parent=39 // loop_header_branch
              %80 = sbr.rel (%p78) target = $region47
            $region44: #{tpu_custom_call.1} parent=39 // loop_body
              %v84 = vld [vmem:[%s82] sm:%s75]
              %85 = vst [vmem:[%s83] sm:%s75] %v84
            $region45: #{tpu_custom_call.1} parent=39 // loop_footer
              %s81 = sadd.s32 1, %s77
            $region46: #{tpu_custom_call.1} parent=39 // loop_footer_branch
              %76 = sbr.rel target = $region42
            $region47: #{tpu_custom_call.1} parent=39 // loop_exit
              _
          $region40: #{tpu_custom_call.1} parent=24 // pred_fallthru
            _
        $region25: #{tpu_custom_call.1} parent=20 // pred_fallthru
          _
        // Predicated region
        $region26: #{tpu_custom_call.1} parent=20 // pred_check
          _
        $region27: #{tpu_custom_call.1} parent=20 // pred_check_branch
          %59 = sbr.rel (0) target = $region29
        $region28: #{tpu_custom_call.1} parent=20 // pred_region
          %s61 = ssub.s32 4, 1
          loop: start=0, step=1, limit=1
          $region30: #{tpu_custom_call.1} parent=28 // loop_pre_header
            _
          $region31: #{tpu_custom_call.1} parent=28 // loop_header
            %s63 = sphi 0, %s67
            %p64 = scmp.ge.s32.totalorder %s63, 1
            %s68 = sphi [#allocation3], [#allocation3]
            %s69 = sphi %s3, %s3
          $region32: #{tpu_custom_call.1} parent=28 // loop_header_branch
            %66 = sbr.rel (%p64) target = $region36
          $region33: #{tpu_custom_call.1} parent=28 // loop_body
            %v70 = vld [vmem:[%s68] sm:%s61]
            %71 = vst [vmem:[%s69] sm:%s61] %v70
          $region34: #{tpu_custom_call.1} parent=28 // loop_footer
            %s67 = sadd.s32 1, %s63
          $region35: #{tpu_custom_call.1} parent=28 // loop_footer_branch
            %62 = sbr.rel target = $region31
          $region36: #{tpu_custom_call.1} parent=28 // loop_exit
            _
        $region29: #{tpu_custom_call.1} parent=20 // pred_fallthru
          _
      $region21: #{tpu_custom_call.1} parent=16 // pred_fallthru
        _
      %86 = vnop
    $region17: #{tpu_custom_call.1} parent=1 // pred_fallthru
      _
    // Predicated region
    $region48: #{tpu_custom_call.1} parent=1 // pred_check
      _
    $region49: #{tpu_custom_call.1} parent=1 // pred_check_branch
      %88 = sbr.rel (0) target = $region51
    $region50: #{tpu_custom_call.1} parent=1 // pred_region
      _
    $region51: #{tpu_custom_call.1} parent=1 // pred_fallthru
      _

</llo_original>
